<compile_context>
chip_gen: v7x
topology: tpu7x:2x2x1
jax: 0.10.0
libtpu: 0.0.40
codegen_flags: <defaults>
</compile_context>

<pallas_src>
import jax
import jax.numpy as jnp
from jax.experimental import pallas as pl
from jax.experimental.pallas import tpu as pltpu

IGNORE_LABEL = 255


def _pick_tile(hw, c):
    """Pixels per grid step: as large as possible under a ~4 MiB/buffer budget."""
    budget = 4 * 1024 * 1024                       # one logits buffer (x2 dbl-buffered)
    tp = budget // (4 * max(int(c), 1))            # f32 logits
    tp = (tp // 128) * 128
    tp = max(128, min(2048, tp))
    tp = min(tp, ((hw + 127) // 128) * 128)        # never bigger than needed
    return int(tp)


def _make_kernel(ignore_label, hw, tile_p, has_weight):
    def kernel(*refs):
        if has_weight:
            pred_ref, tgt_ref, w_ref, loss_ref, den_ref, acc_loss, acc_den = refs
        else:
            pred_ref, tgt_ref, loss_ref, den_ref, acc_loss, acc_den = refs
            w_ref = None

        j = pl.program_id(1)

        @pl.when(j == 0)
        def _():
            acc_loss[...] = jnp.zeros_like(acc_loss)
            acc_den[...] = jnp.zeros_like(acc_den)

        logits = pred_ref[...].astype(jnp.float32)          # (C, TP) classes on sublanes
        tgt = tgt_ref[...]                                   # (1, TP) int32

        valid = jnp.logical_and(tgt >= 0, tgt != ignore_label)          # (1, TP)
        if hw % tile_p != 0:
            # Mask the padded tail of the last tile (padding contents unspecified).
            col = jax.lax.broadcasted_iota(jnp.int32, tgt.shape, 1) + j * tile_p
            inb = col < hw                                               # (1, TP)
            valid = jnp.logical_and(valid, inb)
            logits = jnp.where(inb, logits, 0.0)   # keep lse finite on garbage columns
        validf = valid.astype(jnp.float32)

        # numerically-stable log-sum-exp over the class (sublane) axis
        m = jnp.max(logits, axis=0, keepdims=True)                       # (1, TP)
        lse = jnp.log(jnp.sum(jnp.exp(logits - m), axis=0, keepdims=True)) + m

        # gather target logit (and class weight) via one-hot select + class reduce
        classes = jax.lax.broadcasted_iota(jnp.int32, logits.shape, 0)   # (C, TP)
        onehot = classes == tgt                                          # (C, TP)
        tgt_logit = jnp.sum(jnp.where(onehot, logits, 0.0), axis=0, keepdims=True)
        nll = lse - tgt_logit                                            # (1, TP)

        if has_weight:
            wcol = w_ref[...].astype(jnp.float32)                        # (C, 1)
            w_t = jnp.sum(jnp.where(onehot, wcol, 0.0), axis=0, keepdims=True)
            w_t = w_t * validf
        else:
            w_t = validf

        # element-wise (VPU) partial accumulation; scalar reduce deferred to the end
        acc_loss[...] += nll * w_t
        acc_den[...] += w_t

        @pl.when(j == pl.num_programs(1) - 1)
        def _():
            loss_ref[...] = jnp.sum(acc_loss[...], axis=1, keepdims=True)
            den_ref[...] = jnp.sum(acc_den[...], axis=1, keepdims=True)

    return kernel


def cross_entropy_2d(predict, target, weight=None, ignore_label=IGNORE_LABEL):
    """predict: (n, c, h, w) float; target: (n, h, w) int; weight: (c,) or None."""
    n, c, h, w = predict.shape
    hw = h * w

    logits = predict.reshape(n, c, hw)                 # free reshape of NCHW
    tgt = target.reshape(n, 1, hw).astype(jnp.int32)

    tile_p = _pick_tile(hw, c)
    grid = (n, pl.cdiv(hw, tile_p))
    has_weight = weight is not None

    in_specs = [
        pl.BlockSpec((None, c, tile_p), lambda b, j: (b, 0, j)),   # logits tile
        pl.BlockSpec((None, 1, tile_p), lambda b, j: (b, 0, j)),   # targets tile
    ]
    args = [logits, tgt]
    if has_weight:
        wcol = jnp.asarray(weight, dtype=jnp.float32).reshape(c, 1)
        in_specs.append(pl.BlockSpec((c, 1), lambda b, j: (0, 0)))
        args.append(wcol)

    kernel = _make_kernel(ignore_label, hw, tile_p, has_weight)

    loss_parts, den_parts = pl.pallas_call(
        kernel,
        out_shape=(jax.ShapeDtypeStruct((n, 1, 1), jnp.float32),
                   jax.ShapeDtypeStruct((n, 1, 1), jnp.float32)),
        grid_spec=pltpu.PrefetchScalarGridSpec(
            num_scalar_prefetch=0,
            grid=grid,
            in_specs=in_specs,
            out_specs=[
                pl.BlockSpec((None, 1, 1), lambda b, j: (b, 0, 0)),
                pl.BlockSpec((None, 1, 1), lambda b, j: (b, 0, 0)),
            ],
            scratch_shapes=[pltpu.VMEM((1, tile_p), jnp.float32),
                            pltpu.VMEM((1, tile_p), jnp.float32)],
        ),
        compiler_params=pltpu.CompilerParams(
            dimension_semantics=("parallel", "arbitrary"),
            vmem_limit_bytes=32 * 1024 * 1024),
    )(*args)

    loss_sum = jnp.sum(loss_parts)
    denom = jnp.sum(den_parts)
    # PyTorch returns zeros(1) when there are no valid targets.
    return jnp.where(denom > 0, loss_sum / jnp.maximum(denom, 1e-30),
                     jnp.float32(0.0))


def _reference(predict, target, weight=None, ignore_label=IGNORE_LABEL):
    n, c, h, w = predict.shape
    logits = jnp.transpose(predict, (0, 2, 3, 1)).reshape(-1, c).astype(jnp.float32)
    tgt = target.reshape(-1).astype(jnp.int32)
    valid = jnp.logical_and(tgt >= 0, tgt != ignore_label)
    logz = jax.nn.logsumexp(logits, axis=-1)
    tgt_safe = jnp.where(valid, tgt, 0)
    tgt_logit = jnp.take_along_axis(logits, tgt_safe[:, None], axis=-1)[:, 0]
    nll = logz - tgt_logit
    wvec = jnp.ones((c,), jnp.float32) if weight is None else jnp.asarray(weight, jnp.float32)
    w_t = wvec[tgt_safe]
    validf = valid.astype(jnp.float32)
    num = jnp.sum(nll * w_t * validf)
    den = jnp.sum(w_t * validf)
    return jnp.where(den > 0, num / jnp.maximum(den, 1e-30), 0.0)


if __name__ == "__main__":
    key = jax.random.PRNGKey(0)
    k1, k2, k3, k4 = jax.random.split(key, 4)

    # Case 1: unweighted, evenly-divisible pixel count.
    n, c, h, w = 2, 4, 16, 16
    predict = jax.random.normal(k1, (n, c, h, w), dtype=jnp.float32)
    target = jax.random.randint(k2, (n, h, w), 0, c).astype(jnp.int32)
    ignore_mask = jax.random.uniform(k3, (n, h, w)) < 0.2
    target = jnp.where(ignore_mask, IGNORE_LABEL, target)

    loss = jax.block_until_ready(cross_entropy_2d(predict, target))
    ref = jax.block_until_ready(_reference(predict, target))
    assert jnp.allclose(loss, ref, rtol=1e-5, atol=1e-5), (loss, ref)

    # Case 2: with class weights.
    wvec = jnp.array([0.5, 1.0, 2.0, 0.25], dtype=jnp.float32)
    loss_w = jax.block_until_ready(cross_entropy_2d(predict, target, weight=wvec))
    ref_w = jax.block_until_ready(_reference(predict, target, weight=wvec))
    assert jnp.allclose(loss_w, ref_w, rtol=1e-5, atol=1e-5), (loss_w, ref_w)

    # Case 3: odd spatial size (exercises in-kernel tail masking, no padding)
    # and odd class count, with weights.
    n2, c2, h2, w2 = 2, 5, 16, 13
    predict2 = jax.random.normal(k4, (n2, c2, h2, w2), dtype=jnp.float32)
    target2 = jax.random.randint(k2, (n2, h2, w2), 0, c2).astype(jnp.int32)
    ignore_mask2 = jax.random.uniform(k3, (n2, h2, w2)) < 0.3
    target2 = jnp.where(ignore_mask2, IGNORE_LABEL, target2)
    wvec2 = jnp.array([1.0, 0.5, 2.0, 1.5, 0.75], dtype=jnp.float32)

    loss2 = jax.block_until_ready(cross_entropy_2d(predict2, target2, weight=wvec2))
    ref2 = jax.block_until_ready(_reference(predict2, target2, weight=wvec2))
    assert jnp.allclose(loss2, ref2, rtol=1e-5, atol=1e-5), (loss2, ref2)

    print("KERNEL_OK")
</pallas_src>

<mosaic_0001>
module attributes {stable_mosaic.version = 11 : i64} {
  func.func @kernel(%arg0: i32, %arg1: i32, %arg2: memref<1x4x256xf32, #tpu.memory_space<vmem>>, %arg3: memref<1x1x256xi32, #tpu.memory_space<vmem>>, %arg4: memref<1x1x1xf32, #tpu.memory_space<vmem>>, %arg5: memref<1x1x1xf32, #tpu.memory_space<vmem>>, %arg6: memref<1x256xf32, #tpu.memory_space<vmem>>, %arg7: memref<1x256xf32, #tpu.memory_space<vmem>>) attributes {dimension_semantics = [#tpu.dimension_semantics<parallel>, #tpu.dimension_semantics<arbitrary>], iteration_bounds = array<i64: 2, 1>, scalar_prefetch = 0 : i64, scratch_operands = 2 : i64, tpu.core_type = #tpu.core_type<tc>, window_params = [{transform_indices = @transform_0, window_bounds = array<i64: 1, 4, 256>}, {transform_indices = @transform_1, window_bounds = array<i64: 1, 1, 256>}, {transform_indices = @transform_2, window_bounds = array<i64: 1, 1, 1>}, {transform_indices = @transform_3, window_bounds = array<i64: 1, 1, 1>}]} {
    %c0_i32 = arith.constant 0 : i32
    %0 = arith.cmpi eq, %arg1, %c0_i32 : i32
    %1 = arith.extui %0 : i1 to i32
    %c0_i32_0 = arith.constant 0 : i32
    %2 = arith.cmpi ne, %1, %c0_i32_0 : i32
    scf.if %2 {
      %cst_20 = arith.constant 0.000000e+00 : f32
      %41 = vector.broadcast %cst_20 : f32 to vector<1x256xf32>
      %c0_21 = arith.constant 0 : index
      %c0_22 = arith.constant 0 : index
      %42 = vector.load %arg6[%c0_21, %c0_22] : memref<1x256xf32, #tpu.memory_space<vmem>>, vector<1x256xf32>
      tpu.vector_store %arg6[%c0_21, %c0_22], %41 {strides = array<i32>} : memref<1x256xf32, #tpu.memory_space<vmem>>, vector<1x256xf32>,
      %cst_23 = arith.constant 0.000000e+00 : f32
      %43 = vector.broadcast %cst_23 : f32 to vector<1x256xf32>
      %c0_24 = arith.constant 0 : index
      %c0_25 = arith.constant 0 : index
      %44 = vector.load %arg7[%c0_24, %c0_25] : memref<1x256xf32, #tpu.memory_space<vmem>>, vector<1x256xf32>
      tpu.vector_store %arg7[%c0_24, %c0_25], %43 {strides = array<i32>} : memref<1x256xf32, #tpu.memory_space<vmem>>, vector<1x256xf32>,
    } else {
    }
    %c0 = arith.constant 0 : index
    %c0_1 = arith.constant 0 : index
    %c0_2 = arith.constant 0 : index
    %3 = vector.load %arg2[%c0, %c0_1, %c0_2] : memref<1x4x256xf32, #tpu.memory_space<vmem>>, vector<1x4x256xf32>
    %4 = vector.shape_cast %3 : vector<1x4x256xf32> to vector<4x256xf32>
    %c0_3 = arith.constant 0 : index
    %c0_4 = arith.constant 0 : index
    %c0_5 = arith.constant 0 : index
    %5 = vector.load %arg3[%c0_3, %c0_4, %c0_5] : memref<1x1x256xi32, #tpu.memory_space<vmem>>, vector<1x1x256xi32>
    %6 = vector.shape_cast %5 : vector<1x1x256xi32> to vector<1x256xi32>
    %c0_i32_6 = arith.constant 0 : i32
    %7 = vector.broadcast %c0_i32_6 : i32 to vector<1x256xi32>
    %8 = arith.cmpi sge, %6, %7 : vector<1x256xi32>
    %c255_i32 = arith.constant 255 : i32
    %9 = vector.broadcast %c255_i32 : i32 to vector<1x256xi32>
    %10 = arith.cmpi ne, %6, %9 : vector<1x256xi32>
    %11 = arith.andi %8, %10 : vector<1x256xi1>
    %12 = arith.extui %11 : vector<1x256xi1> to vector<1x256xi32>
    %13 = arith.sitofp %12 : vector<1x256xi32> to vector<1x256xf32>
    %cst = arith.constant dense<0xFF800000> : vector<256xf32>
    %14 = vector.multi_reduction <maximumf>, %4, %cst [0] : vector<4x256xf32> to vector<256xf32>
    %15 = vector.shape_cast %14 : vector<256xf32> to vector<1x256xf32>
    %16 = vector.broadcast %15 : vector<1x256xf32> to vector<4x256xf32>
    %17 = arith.subf %4, %16 : vector<4x256xf32>
    %18 = math.exp %17 : vector<4x256xf32>
    %cst_7 = arith.constant dense<0.000000e+00> : vector<256xf32>
    %19 = vector.multi_reduction <add>, %18, %cst_7 [0] : vector<4x256xf32> to vector<256xf32>
    %20 = vector.shape_cast %19 : vector<256xf32> to vector<1x256xf32>
    %21 = math.log %20 : vector<1x256xf32>
    %22 = arith.addf %21, %15 : vector<1x256xf32>
    %23 = tpu.iota {dimensions = array<i32: 0>} : vector<4x256xi32>
    %24 = vector.broadcast %6 : vector<1x256xi32> to vector<4x256xi32>
    %25 = arith.cmpi eq, %23, %24 : vector<4x256xi32>
    %cst_8 = arith.constant 0.000000e+00 : f32
    %26 = vector.broadcast %cst_8 : f32 to vector<4x256xf32>
    %27 = arith.select %25, %4, %26 : vector<4x256xi1>, vector<4x256xf32>
    %cst_9 = arith.constant dense<0.000000e+00> : vector<256xf32>
    %28 = vector.multi_reduction <add>, %27, %cst_9 [0] : vector<4x256xf32> to vector<256xf32>
    %29 = vector.shape_cast %28 : vector<256xf32> to vector<1x256xf32>
    %30 = arith.subf %22, %29 : vector<1x256xf32>
    %c0_10 = arith.constant 0 : index
    %c0_11 = arith.constant 0 : index
    %31 = vector.load %arg6[%c0_10, %c0_11] : memref<1x256xf32, #tpu.memory_space<vmem>>, vector<1x256xf32>
    %32 = arith.mulf %30, %13 : vector<1x256xf32>
    %33 = arith.addf %31, %32 : vector<1x256xf32>
    %c0_12 = arith.constant 0 : index
    %c0_13 = arith.constant 0 : index
    %34 = vector.load %arg6[%c0_12, %c0_13] : memref<1x256xf32, #tpu.memory_space<vmem>>, vector<1x256xf32>
    tpu.vector_store %arg6[%c0_12, %c0_13], %33 {strides = array<i32>} : memref<1x256xf32, #tpu.memory_space<vmem>>, vector<1x256xf32>,
    %c0_14 = arith.constant 0 : index
    %c0_15 = arith.constant 0 : index
    %35 = vector.load %arg7[%c0_14, %c0_15] : memref<1x256xf32, #tpu.memory_space<vmem>>, vector<1x256xf32>
    %36 = arith.addf %35, %13 : vector<1x256xf32>
    %c0_16 = arith.constant 0 : index
    %c0_17 = arith.constant 0 : index
    %37 = vector.load %arg7[%c0_16, %c0_17] : memref<1x256xf32, #tpu.memory_space<vmem>>, vector<1x256xf32>
    tpu.vector_store %arg7[%c0_16, %c0_17], %36 {strides = array<i32>} : memref<1x256xf32, #tpu.memory_space<vmem>>, vector<1x256xf32>,
    %c0_i32_18 = arith.constant 0 : i32
    %38 = arith.cmpi eq, %arg1, %c0_i32_18 : i32
    %39 = arith.extui %38 : i1 to i32
    %c0_i32_19 = arith.constant 0 : i32
    %40 = arith.cmpi ne, %39, %c0_i32_19 : i32
    scf.if %40 {
      %c0_20 = arith.constant 0 : index
      %c0_21 = arith.constant 0 : index
      %41 = vector.load %arg6[%c0_20, %c0_21] : memref<1x256xf32, #tpu.memory_space<vmem>>, vector<1x256xf32>
      %cst_22 = arith.constant dense<0.000000e+00> : vector<1xf32>
      %42 = vector.multi_reduction <add>, %41, %cst_22 [1] : vector<1x256xf32> to vector<1xf32>
      %43 = vector.shape_cast %42 : vector<1xf32> to vector<1x1xf32>
      %c0_23 = arith.constant 0 : index
      %c0_24 = arith.constant 0 : index
      %c0_25 = arith.constant 0 : index
      %44 = vector.load %arg4[%c0_23, %c0_24, %c0_25] : memref<1x1x1xf32, #tpu.memory_space<vmem>>, vector<1x1x1xf32>
      %45 = vector.shape_cast %44 : vector<1x1x1xf32> to vector<1x1xf32>
      %46 = vector.shape_cast %43 : vector<1x1xf32> to vector<1x1x1xf32>
      tpu.vector_store %arg4[%c0_23, %c0_24, %c0_25], %46 {strides = array<i32>} : memref<1x1x1xf32, #tpu.memory_space<vmem>>, vector<1x1x1xf32>,
      %c0_26 = arith.constant 0 : index
      %c0_27 = arith.constant 0 : index
      %47 = vector.load %arg7[%c0_26, %c0_27] : memref<1x256xf32, #tpu.memory_space<vmem>>, vector<1x256xf32>
      %cst_28 = arith.constant dense<0.000000e+00> : vector<1xf32>
      %48 = vector.multi_reduction <add>, %47, %cst_28 [1] : vector<1x256xf32> to vector<1xf32>
      %49 = vector.shape_cast %48 : vector<1xf32> to vector<1x1xf32>
      %c0_29 = arith.constant 0 : index
      %c0_30 = arith.constant 0 : index
      %c0_31 = arith.constant 0 : index
      %50 = vector.load %arg5[%c0_29, %c0_30, %c0_31] : memref<1x1x1xf32, #tpu.memory_space<vmem>>, vector<1x1x1xf32>
      %51 = vector.shape_cast %50 : vector<1x1x1xf32> to vector<1x1xf32>
      %52 = vector.shape_cast %49 : vector<1x1xf32> to vector<1x1x1xf32>
      tpu.vector_store %arg5[%c0_29, %c0_30, %c0_31], %52 {strides = array<i32>} : memref<1x1x1xf32, #tpu.memory_space<vmem>>, vector<1x1x1xf32>,
    } else {
    }
    return
  }
  func.func @transform_0(%arg0: i32, %arg1: i32) -> (i32, i32, i32) {
    %c0_i32 = arith.constant 0 : i32
    %c0_i32_0 = arith.constant 0 : i32
    return %arg0, %c0_i32, %arg1 : i32, i32, i32
  }
  func.func @transform_1(%arg0: i32, %arg1: i32) -> (i32, i32, i32) {
    %c0_i32 = arith.constant 0 : i32
    %c0_i32_0 = arith.constant 0 : i32
    return %arg0, %c0_i32, %arg1 : i32, i32, i32
  }
  func.func @transform_2(%arg0: i32, %arg1: i32) -> (i32, i32, i32) {
    %c0_i32 = arith.constant 0 : i32
    %c0_i32_0 = arith.constant 0 : i32
    %c0_i32_1 = arith.constant 0 : i32
    return %arg0, %c0_i32, %c0_i32_0 : i32, i32, i32
  }
  func.func @transform_3(%arg0: i32, %arg1: i32) -> (i32, i32, i32) {
    %c0_i32 = arith.constant 0 : i32
    %c0_i32_0 = arith.constant 0 : i32
    %c0_i32_1 = arith.constant 0 : i32
    return %arg0, %c0_i32, %c0_i32_0 : i32, i32, i32
  }
}

</mosaic_0001>

<llo_original>
// kernel: tpu_custom_call.1
$region0: #{tpu_custom_call.1}
  #allocation0 [shape = 'u32[]', space=smem, size = 0x4, offset = 0x4, fixed_abs, tag = 'smem constant byte address 0x4 - core index']
  #allocation1 [shape = 'u32[144,128]{1,0:T(1,128)}', space=vmem, size = 0x12000, scoped, tag = 'internal scratch']
  #allocation2 [shape = 'f32[1,256]{1,0:T(1,128)}', space=vmem, size = 0x400, scoped, tag = 'scratch operand']
  #allocation3 [shape = 'f32[1,256]{1,0:T(1,128)}', space=vmem, size = 0x400, scoped, tag = 'scratch operand']
  %s0 = inlined_call_operand.hbm [shape: f32[2,4,256], index: 0, kind: input, shape index: {}]
  %s1 = inlined_call_operand.hbm [shape: s32[2,1,256], index: 1, kind: input, shape index: {}]
  %s2 = inlined_call_operand.vmem [shape: f32[2,1,1], index: 2, kind: output, shape index: {0}]
  %s3 = inlined_call_operand.vmem [shape: f32[2,1,1], index: 3, kind: output, shape index: {1}]
  %4 = xla_tuple %s2, %s3
  %s5 = sld [smem:[#allocation0]]
  $region65: #{tpu_custom_call.1} parent=0
    _
  %s7 = ssub.s32 1, %s5
  %s8 = scalar_select 0, %s7, %s5
  $region1: #{tpu_custom_call.1} parent=0
    #allocation4 [shape = 'u8[8192]{0}', space=vmem, size = 0x2000, scoped, tag = 'input window, operand 0']
    #allocation5 [shape = 's32[2]{0}', space=sflag, size = 0x8, scoped, tag = 'scoped memory for tpu_custom_call.1']
    #allocation6 [shape = 'u8[2048]{0}', space=vmem, size = 0x800, scoped, tag = 'input window, operand 1']
    #allocation7 [shape = 's32[2]{0}', space=sflag, size = 0x8, scoped, tag = 'scoped memory for tpu_custom_call.1']
    %9 = vsyncpa [#allocation5], 0
    %s10 = scalar_lea.sflag [#allocation5], 1
    %11 = vsyncpa %s10, 0
    %12 = vsyncpa [#allocation7], 0
    %s13 = scalar_lea.sflag [#allocation7], 1
    %14 = vsyncpa %s13, 0
    loop: start=0, step=1, limit=4
    $region2: #{tpu_custom_call.1} parent=1 // loop_pre_header
      _
    $region3: #{tpu_custom_call.1} parent=1 // loop_header
      %s16 = sphi 0, %s20
      %p17 = scmp.ge.s32.totalorder %s16, 4
      %s23 = sphi 0, %s35
      %s24 = sphi 0, %s31
      %s25 = sphi 0, %s23
      %s26 = sphi 0, %s24
      %s27 = sphi 0, %s25
      %s28 = sphi 0, %s26
      %s40 = sphi 0, %s42
      %s43 = sphi 0, %s40
      %s44 = sphi 0, %s43
      %s60 = sphi 0, %s44
      %s68 = sphi 0, %s70
      %s71 = sphi 0, %s68
      %s72 = sphi 0, %s71
      %s88 = sphi 0, %s72
      %s94 = sphi 0, %s96
      %s97 = sphi 0, %s94
      %s98 = sphi 0, %s97
      %s114 = sphi 0, %s98
      %s120 = sphi 0, %s122
      %s123 = sphi 0, %s120
      %s124 = sphi 0, %s123
      %s140 = sphi 0, %s124
    $region4: #{tpu_custom_call.1} parent=1 // loop_header_branch
      %19 = sbr.rel (%p17) target = $region8
    $region5: #{tpu_custom_call.1} parent=1 // loop_body
      %s21 = ssub.s32 %s16, 1
      %s22 = ssub.s32 %s16, 2
      %s29 = sadd.s32 1, %s24
      %p30 = scmp.ge.s32.totalorder %s29, 1
      %s31 = scalar_select %p30, 0, %s29
      %s32 = sadd.s32 1, %s23
      %s33 = scalar_select %p30, %s32, %s23
      %p34 = scmp.ge.s32.totalorder %s33, 2
      %s35 = scalar_select %p34, 0, %s33
      %s36 = ssub.s32 %s23, %s35
      %s37 = ssub.s32 %s24, %s31
      %s38 = sor.u32 %s36, %s37
      %p39 = scmp.eq.s32.totalorder %s38, 0
      %s41 = sadd.s32 %s40, 1
      %s42 = scalar_select %p39, %s40, %s41
      %p45 = pneg %p39
      %p46 = scmp.eq.s32.totalorder %s16, 1
      %p47 = por %p45, %p46
      %p48 = scmp.ne.s32.totalorder %s40, %s43
      %p49 = scmp.eq.s32.totalorder %s16, 0
      %p50 = por %p48, %p49
      %p51 = scmp.ne.s32.totalorder %s40, %s43
      %p52 = scmp.eq.s32.totalorder %s21, 1
      %p53 = por %p51, %p52
      %p54 = scmp.ne.s32.totalorder %s43, %s44
      %p55 = scmp.eq.s32.totalorder %s21, 0
      %p56 = por %p54, %p55
      %p57 = scmp.ne.s32.totalorder %s43, %s44
      %p58 = scmp.eq.s32.totalorder %s22, 1
      %p59 = por %p57, %p58
      %p61 = scmp.ne.s32.totalorder %s44, %s60
      %p62 = scmp.eq.s32.totalorder %s22, 0
      %p63 = por %p61, %p62
      %s64 = ssub.s32 %s23, %s35
      %s65 = ssub.s32 %s24, %s31
      %s66 = sor.u32 %s64, %s65
      %p67 = scmp.eq.s32.totalorder %s66, 0
      %s69 = sadd.s32 %s68, 1
      %s70 = scalar_select %p67, %s68, %s69
      %p73 = pneg %p67
      %p74 = scmp.eq.s32.totalorder %s16, 1
      %p75 = por %p73, %p74
      %p76 = scmp.ne.s32.totalorder %s68, %s71
      %p77 = scmp.eq.s32.totalorder %s16, 0
      %p78 = por %p76, %p77
      %p79 = scmp.ne.s32.totalorder %s68, %s71
      %p80 = scmp.eq.s32.totalorder %s21, 1
      %p81 = por %p79, %p80
      %p82 = scmp.ne.s32.totalorder %s71, %s72
      %p83 = scmp.eq.s32.totalorder %s21, 0
      %p84 = por %p82, %p83
      %p85 = scmp.ne.s32.totalorder %s71, %s72
      %p86 = scmp.eq.s32.totalorder %s22, 1
      %p87 = por %p85, %p86
      %p89 = scmp.ne.s32.totalorder %s72, %s88
      %p90 = scmp.eq.s32.totalorder %s22, 0
      %p91 = por %p89, %p90
      %s92 = ssub.s32 %s23, %s35
      %p93 = scmp.eq.s32.totalorder %s92, 0
      %s95 = sadd.s32 %s94, 1
      %s96 = scalar_select %p93, %s94, %s95
      %p99 = pneg %p93
      %p100 = scmp.eq.s32.totalorder %s16, 1
      %p101 = por %p99, %p100
      %p102 = scmp.ne.s32.totalorder %s94, %s97
      %p103 = scmp.eq.s32.totalorder %s16, 0
      %p104 = por %p102, %p103
      %p105 = scmp.ne.s32.totalorder %s94, %s97
      %p106 = scmp.eq.s32.totalorder %s21, 1
      %p107 = por %p105, %p106
      %p108 = scmp.ne.s32.totalorder %s97, %s98
      %p109 = scmp.eq.s32.totalorder %s21, 0
      %p110 = por %p108, %p109
      %p111 = scmp.ne.s32.totalorder %s97, %s98
      %p112 = scmp.eq.s32.totalorder %s22, 1
      %p113 = por %p111, %p112
      %p115 = scmp.ne.s32.totalorder %s98, %s114
      %p116 = scmp.eq.s32.totalorder %s22, 0
      %p117 = por %p115, %p116
      %s118 = ssub.s32 %s23, %s35
      %p119 = scmp.eq.s32.totalorder %s118, 0
      %s121 = sadd.s32 %s120, 1
      %s122 = scalar_select %p119, %s120, %s121
      %p125 = pneg %p119
      %p126 = scmp.eq.s32.totalorder %s16, 1
      %p127 = por %p125, %p126
      %p128 = scmp.ne.s32.totalorder %s120, %s123
      %p129 = scmp.eq.s32.totalorder %s16, 0
      %p130 = por %p128, %p129
      %p131 = scmp.ne.s32.totalorder %s120, %s123
      %p132 = scmp.eq.s32.totalorder %s21, 1
      %p133 = por %p131, %p132
      %p134 = scmp.ne.s32.totalorder %s123, %s124
      %p135 = scmp.eq.s32.totalorder %s21, 0
      %p136 = por %p134, %p135
      %p137 = scmp.ne.s32.totalorder %s123, %s124
      %p138 = scmp.eq.s32.totalorder %s22, 1
      %p139 = por %p137, %p138
      %p141 = scmp.ne.s32.totalorder %s124, %s140
      %p142 = scmp.eq.s32.totalorder %s22, 0
      %p143 = por %p141, %p142
      %p144 = scmp.le.s32.totalorder 1, %s16
      %p145 = scmp.lt.s32.totalorder %s16, 3
      %p146 = pnand %p144, %p145
      %p147 = pneg %p146
      // Predicated region
      $region9: #{tpu_custom_call.1} parent=5 // pred_check
        _
      $region10: #{tpu_custom_call.1} parent=5 // pred_check_branch
        %149 = sbr.rel (%p146) target = $region12
      $region11: #{tpu_custom_call.1} parent=5 // pred_region
        %s150 = ssub.s32 %s16, 1
      $region12: #{tpu_custom_call.1} parent=5 // pred_fallthru
        _
      %p151 = scmp.lt.s32.totalorder %s16, 2
      // Predicated region
      $region13: #{tpu_custom_call.1} parent=5 // pred_check
        %p152 = pneg %p151
      $region14: #{tpu_custom_call.1} parent=5 // pred_check_branch
        %154 = sbr.rel (%p152) target = $region16
      $region15: #{tpu_custom_call.1} parent=5 // pred_region
        // Predicated region
        $region17: #{tpu_custom_call.1} parent=15 // pred_check
          %p155 = pneg %p50
        $region18: #{tpu_custom_call.1} parent=15 // pred_check_branch
          %157 = sbr.rel (%p155) target = $region20
        $region19: #{tpu_custom_call.1} parent=15 // pred_region
          %s158 = sand.u32 %s40, 1
          %s159 = scalar_lea.sflag [#allocation5], %s158
          %s160 = sand.u32 %s40, 1
          %s161 = smul.addr %s160, 8
          %s162 = scalar_lea.vmem [#allocation4], %s161
          %s163 = smul.u32 2, %s24
          %s165 = ssub.s32 128, 128
          %166 = vsyncadd %s159, %s165
          %s167 = smul.addr %s23, 2
          %s168 = sadd.s32 %s163, %s167
          %s169 = smul.addr %s168, 64
          %s170 = scalar_lea.hbm %s0, %s169
          %s172 = sshll.u32 %s162, 4
          %s173 = int_to_ptr.vmem [resolvable:$true] %s172
          %175 = dma.hbm_to_vmem [thread:$0]  %s170, 128, %s173, %s159
        $region20: #{tpu_custom_call.1} parent=15 // pred_fallthru
          _
        // Predicated region
        $region21: #{tpu_custom_call.1} parent=15 // pred_check
          %p176 = pneg %p78
        $region22: #{tpu_custom_call.1} parent=15 // pred_check_branch
          %178 = sbr.rel (%p176) target = $region24
        $region23: #{tpu_custom_call.1} parent=15 // pred_region
          %s179 = sand.u32 %s68, 1
          %s180 = scalar_lea.sflag [#allocation7], %s179
          %s181 = sand.u32 %s68, 1
          %s182 = smul.addr %s181, 2
          %s183 = scalar_lea.vmem [#allocation6], %s182
          %s184 = smul.u32 2, %s24
          %s186 = ssub.s32 32, 32
          %187 = vsyncadd %s180, %s186
          %s188 = smul.addr %s23, 2
          %s189 = sadd.s32 %s184, %s188
          %s190 = smul.addr %s189, 16
          %s191 = scalar_lea.hbm %s1, %s190
          %s193 = sshll.u32 %s183, 4
          %s194 = int_to_ptr.vmem [resolvable:$true] %s193
          %196 = dma.hbm_to_vmem [thread:$0]  %s191, 32, %s194, %s180
        $region24: #{tpu_custom_call.1} parent=15 // pred_fallthru
          _
      $region16: #{tpu_custom_call.1} parent=5 // pred_fallthru
        _
      %p197 = scmp.le.s32.totalorder 1, %s16
      %p198 = scmp.lt.s32.totalorder %s16, 3
      %p199 = pnand %p197, %p198
      %p200 = pneg %p199
      // Predicated region
      $region25: #{tpu_custom_call.1} parent=5 // pred_check
        _
      $region26: #{tpu_custom_call.1} parent=5 // pred_check_branch
        %202 = sbr.rel (%p199) target = $region28
      $region27: #{tpu_custom_call.1} parent=5 // pred_region
        %s203 = ssub.s32 %s16, 1
        %s204 = sand.u32 %s43, 1
        %s205 = scalar_lea.sflag [#allocation5], %s204
        %s206 = sand.u32 %s43, 1
        %s207 = smul.addr %s206, 8
        %s208 = scalar_lea.vmem [#allocation4], %s207
        // Predicated region
        $region29: #{tpu_custom_call.1} parent=27 // pred_check
          %p209 = pneg %p56
        $region30: #{tpu_custom_call.1} parent=27 // pred_check_branch
          %211 = sbr.rel (%p209) target = $region32
        $region31: #{tpu_custom_call.1} parent=27 // pred_region
          %212 = dma.done %s205, 128
        $region32: #{tpu_custom_call.1} parent=27 // pred_fallthru
          _
        %s213 = sand.u32 %s71, 1
        %s214 = scalar_lea.sflag [#allocation7], %s213
        %s215 = sand.u32 %s71, 1
        %s216 = smul.addr %s215, 2
        %s217 = scalar_lea.vmem [#allocation6], %s216
        // Predicated region
        $region33: #{tpu_custom_call.1} parent=27 // pred_check
          %p218 = pneg %p84
        $region34: #{tpu_custom_call.1} parent=27 // pred_check_branch
          %220 = sbr.rel (%p218) target = $region36
        $region35: #{tpu_custom_call.1} parent=27 // pred_region
          %221 = dma.done %s214, 32
        $region36: #{tpu_custom_call.1} parent=27 // pred_fallthru
          _
        %s222 = sand.u32 %s43, 1
        %s223 = scalar_lea.sflag [#allocation5], %s222
        %s224 = sand.u32 %s43, 1
        %s225 = smul.addr %s224, 8
        %s226 = scalar_lea.vmem [#allocation4], %s225
        %p227 = pneg %p56
        %p228 = pneg %p53
        %s229 = sand.u32 %s71, 1
        %s230 = scalar_lea.sflag [#allocation7], %s229
        %s231 = sand.u32 %s71, 1
        %s232 = smul.addr %s231, 2
        %s233 = scalar_lea.vmem [#allocation6], %s232
        %p234 = pneg %p84
        %p235 = pneg %p81
        %p236 = pneg %p110
        %p237 = pneg %p107
        %p238 = scmp.lt.s32.totalorder %s25, 1
        %s239 = scalar_select %p238, %s25, 1
        %s240 = scalar_lea.vmem %s2, %s239
        %p241 = pneg %p136
        %p242 = pneg %p133
        %p243 = scmp.lt.s32.totalorder %s25, 1
        %s244 = scalar_select %p243, %s25, 1
        %s245 = scalar_lea.vmem %s3, %s244
        %s246 = smul.u32 2, %s26
        %s247 = smul.u32 2, %s26
        %p248 = scmp.lt.s32.totalorder %s25, 1
        %s249 = scalar_select %p248, %s25, 1
        %s250 = scalar_lea.vmem %s2, %s249
        %p251 = scmp.lt.s32.totalorder %s25, 1
        %s252 = scalar_select %p251, %s25, 1
        %s253 = scalar_lea.vmem %s3, %s252
        %p254 = scmp.eq.s32.totalorder %s26, 0
        // Predicated region
        $region37: #{tpu_custom_call.1} parent=27 // pred_check
          %p255 = pneg %p254
        $region38: #{tpu_custom_call.1} parent=27 // pred_check_branch
          %257 = sbr.rel (%p255) target = $region40
        $region39: #{tpu_custom_call.1} parent=27 // pred_region
          %v258 = vlaneseq
          %vm259 = vcmp.ge.s32.totalorder %v258, 0
          %vm260 = vcmp.lt.s32.totalorder %v258, 256
          %vm261 = vmand %vm259, %vm260
          %262 = vst.msk [vmem:[#allocation2] sm:$0x3] %vm261, 0.0
          %263 = vst.msk [vmem:[#allocation3] sm:$0x3] %vm261, 0.0
        $region40: #{tpu_custom_call.1} parent=27 // pred_fallthru
          _
        %v264 = vld [vmem:[%s208] sm:$0xff]
        %v265 = vld [vmem:[%s217] sm:$0x3]
        %vm266 = vcmp.ge.s32.totalorder %v265, 0
        %vm267 = vcmp.ne.s32.totalorder %v265, 255
        %vm268 = vmand %vm266, %vm267
        %v269 = vsel %vm268, 1, 0
        %v270 = vcvt.s32.f32 %v269
        %v272 = vcombine.high %v264, %v264
        %vm274 = vcmask 1043456
        %v275 = vsel %vm274, %v264, -inf
        %v276 = vrot.slane %v275, 4
        %v277 = vmax.f32 %v275, %v276
        %v278 = vrot.slane %v277, 2
        %v279 = vmax.f32 %v277, %v278
        %v280 = vrot.slane %v279, 1
        %v281 = vmax.f32 %v279, %v280
        %v282 = vsel %vm274, %v272, -inf
        %v283 = vrot.slane %v282, 4
        %v284 = vmax.f32 %v282, %v283
        %v285 = vrot.slane %v284, 2
        %v286 = vmax.f32 %v284, %v285
        %v287 = vrot.slane %v286, 1
        %v288 = vmax.f32 %v286, %v287
        %v291 = vcombine.low %v281, %v288
        %v293 = vsub.f32 %v264, %v291
        %v294 = vmul.f32 %v293, 1.442695
        %v295 = vpow.pop %v294
        %v297 = vcombine.high %v295, %v295
        %v299 = vsel %vm274, %v295, 0.0
        %v300 = vrot.slane %v299, 4
        %v301 = vadd.f32 %v299, %v300
        %v302 = vrot.slane %v301, 2
        %v303 = vadd.f32 %v301, %v302
        %v304 = vrot.slane %v303, 1
        %v305 = vadd.f32 %v303, %v304
        %v306 = vsel %vm274, %v297, 0.0
        %v307 = vrot.slane %v306, 4
        %v308 = vadd.f32 %v306, %v307
        %v309 = vrot.slane %v308, 2
        %v310 = vadd.f32 %v308, %v309
        %v311 = vrot.slane %v310, 1
        %v312 = vadd.f32 %v310, %v311
        %v313 = vlog2.pop %v305
        %v314 = vmul.f32 %v313, 0.6931472
        %v315 = vlog2.pop %v312
        %v316 = vmul.f32 %v315, 0.6931472
        %v317 = vadd.f32 %v314, %v281
        %v318 = vadd.f32 %v316, %v288
        %v319 = vlaneseq
        %v320 = vshrl.u32 %v319, 7
        %v321 = vlaneseq
        %v322 = vshrl.u32 %v321, 7
        %v323 = vsub.s32 0, %v322
        %v324 = vrot.slane %v265, %v323
        %v325 = vlaneseq
        %v326 = vshrl.u32 %v325, 7
        %v327 = vsub.s32 1, %v326
        %v328 = vrot.slane %v265, %v327
        %vm329 = vcmp.eq.s32.totalorder %v320, %v324
        %vm330 = vcmp.eq.s32.totalorder %v320, %v328
        %v331 = vsel %vm329, %v264, 0.0
        %v332 = vsel %vm330, %v272, 0.0
        %v333 = vsel %vm274, %v331, 0.0
        %v334 = vrot.slane %v333, 4
        %v335 = vadd.f32 %v333, %v334
        %v336 = vrot.slane %v335, 2
        %v337 = vadd.f32 %v335, %v336
        %v338 = vrot.slane %v337, 1
        %v339 = vadd.f32 %v337, %v338
        %v340 = vsel %vm274, %v332, 0.0
        %v341 = vrot.slane %v340, 4
        %v342 = vadd.f32 %v340, %v341
        %v343 = vrot.slane %v342, 2
        %v344 = vadd.f32 %v342, %v343
        %v345 = vrot.slane %v344, 1
        %v346 = vadd.f32 %v344, %v345
        %v347 = vsub.f32 %v317, %v339
        %v348 = vsub.f32 %v318, %v346
        %v349 = vld [vmem:[#allocation2] sm:$0x3]
        %v351 = vlaneseq
        %v352 = vshrl.u32 %v351, 7
        %v353 = vsub.s32 0, %v352
        %v354 = vrot.slane %v270, %v353
        %v355 = vlaneseq
        %v356 = vshrl.u32 %v355, 7
        %v357 = vsub.s32 1, %v356
        %v358 = vrot.slane %v270, %v357
        %v361 = vmul.f32 %v347, %v354
        %v362 = vmul.f32 %v348, %v358
        %v365 = vcombine.low %v361, %v362
        %v367 = vunpack.c.l.s4 1966171168
        %v368 = vunpack.c.0.s8 %v367
        %v369 = vlaneseq
        %v370 = vshrl.u32 %v369, 7
        %v371 = vsub.s32 %v368, %v370
        %v372 = vrot.slane %v365, %v371
        %v374 = vunpack.c.l.s4 1966171168
        %v375 = vunpack.c.0.s8 %v374
        %v376 = vlaneseq
        %v377 = vshrl.u32 %v376, 7
        %v378 = vsub.s32 %v375, %v377
        %v379 = vrot.slane %v372, %v378
        %v381 = vadd.f32 %v349, %v379
        %v382 = vlaneseq
        %vm383 = vcmp.ge.s32.totalorder %v382, 0
        %vm384 = vcmp.lt.s32.totalorder %v382, 256
        %vm385 = vmand %vm383, %vm384
        %386 = vst.msk [vmem:[#allocation2] sm:$0x3] %vm385, %v381
        %v387 = vld [vmem:[#allocation3] sm:$0x3]
        %v388 = vadd.f32 %v387, %v270
        %389 = vst.msk [vmem:[#allocation3] sm:$0x3] %vm385, %v388
        // Predicated region
        $region41: #{tpu_custom_call.1} parent=27 // pred_check
          %p390 = pneg %p254
        $region42: #{tpu_custom_call.1} parent=27 // pred_check_branch
          %392 = sbr.rel (%p390) target = $region44
        $region43: #{tpu_custom_call.1} parent=27 // pred_region
          %v393 = vld [vmem:[#allocation2] sm:$0x3]
          %v395 = vlaneseq
          %v396 = vshrl.u32 %v395, 7
          %v397 = vsub.s32 0, %v396
          %v398 = vrot.slane %v393, %v397
          %v399 = vlaneseq
          %v400 = vshrl.u32 %v399, 7
          %v401 = vsub.s32 1, %v400
          %v402 = vrot.slane %v393, %v401
          %vm405 = vcmask 1040384
          %v406 = vsel %vm405, %v398, 0.0
          %v407 = vsel %vm405, %v402, 0.0
          %v408 = vadd.f32 %v406, %v407
          %409 = vadd.xlane.f32.xlu0 %v408
          %v410 = vpop.xlane.xlu0 %409
          %vm411 = vcmask 0
          %412 = vst.msk [vmem:[%s250] sm:$0x1] %vm411, %v410
          %v413 = vld [vmem:[#allocation3] sm:$0x3]
          %v415 = vlaneseq
          %v416 = vshrl.u32 %v415, 7
          %v417 = vsub.s32 0, %v416
          %v418 = vrot.slane %v413, %v417
          %v419 = vlaneseq
          %v420 = vshrl.u32 %v419, 7
          %v421 = vsub.s32 1, %v420
          %v422 = vrot.slane %v413, %v421
          %v425 = vsel %vm405, %v418, 0.0
          %v426 = vsel %vm405, %v422, 0.0
          %v427 = vadd.f32 %v425, %v426
          %428 = vadd.xlane.f32.xlu0 %v427
          %v429 = vpop.xlane.xlu0 %428
          %430 = vst.msk [vmem:[%s253] sm:$0x1] %vm411, %v429
        $region44: #{tpu_custom_call.1} parent=27 // pred_fallthru
          _
        %p431 = scmp.lt.s32.totalorder %s25, 1
        %s432 = scalar_select %p431, %s25, 1
        %s433 = scalar_lea.vmem %s2, %s432
        %p434 = scmp.lt.s32.totalorder %s25, 1
        %s435 = scalar_select %p434, %s25, 1
        %s436 = scalar_lea.vmem %s3, %s435
        // Predicated region
        $region45: #{tpu_custom_call.1} parent=27 // pred_check
          %p437 = pneg %p107
        $region46: #{tpu_custom_call.1} parent=27 // pred_check_branch
          %439 = sbr.rel (%p437) target = $region48
        $region47: #{tpu_custom_call.1} parent=27 // pred_region
          _
        $region48: #{tpu_custom_call.1} parent=27 // pred_fallthru
          _
        // Predicated region
        $region49: #{tpu_custom_call.1} parent=27 // pred_check
          %p440 = pneg %p133
        $region50: #{tpu_custom_call.1} parent=27 // pred_check_branch
          %442 = sbr.rel (%p440) target = $region52
        $region51: #{tpu_custom_call.1} parent=27 // pred_region
          _
        $region52: #{tpu_custom_call.1} parent=27 // pred_fallthru
          _
      $region28: #{tpu_custom_call.1} parent=5 // pred_fallthru
        _
      %p443 = scmp.le.s32.totalorder 2, %s16
      // Predicated region
      $region53: #{tpu_custom_call.1} parent=5 // pred_check
        %p444 = pneg %p443
      $region54: #{tpu_custom_call.1} parent=5 // pred_check_branch
        %446 = sbr.rel (%p444) target = $region56
      $region55: #{tpu_custom_call.1} parent=5 // pred_region
        %s447 = ssub.s32 %s16, 2
        // Predicated region
        $region57: #{tpu_custom_call.1} parent=55 // pred_check
          %p448 = pneg %p113
        $region58: #{tpu_custom_call.1} parent=55 // pred_check_branch
          %450 = sbr.rel (%p448) target = $region60
        $region59: #{tpu_custom_call.1} parent=55 // pred_region
          %p451 = scmp.lt.s32.totalorder %s27, 1
          %s452 = scalar_select %p451, %s27, 1
          %s453 = scalar_lea.vmem %s2, %s452
        $region60: #{tpu_custom_call.1} parent=55 // pred_fallthru
          _
        // Predicated region
        $region61: #{tpu_custom_call.1} parent=55 // pred_check
          %p454 = pneg %p139
        $region62: #{tpu_custom_call.1} parent=55 // pred_check_branch
          %456 = sbr.rel (%p454) target = $region64
        $region63: #{tpu_custom_call.1} parent=55 // pred_region
          %p457 = scmp.lt.s32.totalorder %s27, 1
          %s458 = scalar_select %p457, %s27, 1
          %s459 = scalar_lea.vmem %s3, %s458
        $region64: #{tpu_custom_call.1} parent=55 // pred_fallthru
          _
      $region56: #{tpu_custom_call.1} parent=5 // pred_fallthru
        _
    $region6: #{tpu_custom_call.1} parent=1 // loop_footer
      %s20 = sadd.s32 1, %s16
    $region7: #{tpu_custom_call.1} parent=1 // loop_footer_branch
      %15 = sbr.rel target = $region3
    $region8: #{tpu_custom_call.1} parent=1 // loop_exit
      _
    %460 = vsyncpa [#allocation5], 1
    %s461 = scalar_lea.sflag [#allocation5], 1
    %462 = vsyncpa %s461, 1
    %463 = vsyncpa [#allocation7], 1
    %s464 = scalar_lea.sflag [#allocation7], 1
    %465 = vsyncpa %s464, 1

</llo_original>
